<compile_context>
chip_gen: v7x
topology: tpu7x:2x2x1
jax: 0.10.0
libtpu: 0.0.40
codegen_flags: <defaults>
</compile_context>

<pallas_src>
import random as pyrandom

import numpy as np
import jax
import jax.numpy as jnp
from jax.experimental import pallas as pl
from jax.experimental.pallas import tpu as pltpu


# ----------------------------- in-kernel RNG ---------------------------------

def _hash32(x):
    """lowbias32 integer finalizer (uint32) -- decorrelates consecutive counters."""
    x = x ^ (x >> 16)
    x = x * np.uint32(0x7FEB352D)
    x = x ^ (x >> 15)
    x = x * np.uint32(0x846CA68B)
    x = x ^ (x >> 16)
    return x


def _normal_icdf(p):
    """Acklam's rational approximation to the standard normal inverse CDF.

    Only uses mul/add/div + one log + one sqrt (all supported by Mosaic and by
    interpret mode).  p must lie strictly inside (0, 1).
    """
    a1, a2, a3 = -3.969683028665376e+01, 2.209460984245205e+02, -2.759285104469687e+02
    a4, a5, a6 = 1.383577518672690e+02, -3.066479806614716e+01, 2.506628277459239e+00
    b1, b2, b3 = -5.447609879822406e+01, 1.615858368580409e+02, -1.556989798598866e+02
    b4, b5 = 6.680131188771972e+01, -1.328068155288572e+01
    c1, c2, c3 = -7.784894002430293e-03, -3.223964580411365e-01, -2.400758277161838e+00
    c4, c5, c6 = -2.549732539343734e+00, 4.374664141464968e+00, 2.938163982698783e+00
    d1, d2, d3, d4 = 7.784695709041462e-03, 3.224671290700398e-01, 2.445134137142996e+00, 3.754408661907416e+00
    plow = 0.02425

    # Fold to (0, 0.5] by symmetry: Phi^-1(p) = -Phi^-1(1-p).
    pm = jnp.maximum(jnp.minimum(p, 1.0 - p), 1e-12)

    # Tail branch (pm < plow)
    q_t = jnp.sqrt(-2.0 * jnp.log(pm))
    x_t = (((((c1 * q_t + c2) * q_t + c3) * q_t + c4) * q_t + c5) * q_t + c6) / \
          ((((d1 * q_t + d2) * q_t + d3) * q_t + d4) * q_t + 1.0)

    # Central branch (pm >= plow)
    q_c = pm - 0.5
    r_c = q_c * q_c
    x_c = (((((a1 * r_c + a2) * r_c + a3) * r_c + a4) * r_c + a5) * r_c + a6) * q_c / \
          (((((b1 * r_c + b2) * r_c + b3) * r_c + b4) * r_c + b5) * r_c + 1.0)

    x_neg = jnp.where(pm < plow, x_t, x_c)          # quantile for pm (<= 0)
    return jnp.where(p > 0.5, -x_neg, x_neg)


# ------------------------------- the kernel ----------------------------------

def _grid_erasing_kernel(seed_ref, flags_ref, x_ref, mask_ref, out_ref):
    # seed_ref:  (1,)           int32 scalar prefetch
    # flags_ref: (num_row_tiles,) int32 scalar prefetch ("tile has erased pixels")
    # x_ref/out_ref: (1, TR, LANE) VMEM blocks, mask_ref: (TR, LANE) int32 VMEM block
    r = pl.program_id(0)
    c = pl.program_id(1)
    num_c = pl.num_programs(1)

    tile_has_erase = flags_ref[r] != 0

    @pl.when(jnp.logical_not(tile_has_erase))
    def _copy():
        out_ref[...] = x_ref[...]

    @pl.when(tile_has_erase)
    def _erase():
        tr, lane = mask_ref.shape
        # Unique 32-bit counter per element of the whole (C, R, LANE) array, so
        # every tile / channel gets distinct noise (no per-tile reseeding needed).
        tile_id = r * num_c + c
        base = tile_id * (tr * lane)
        row_i = jax.lax.broadcasted_iota(jnp.int32, (tr, lane), 0)
        col_i = jax.lax.broadcasted_iota(jnp.int32, (tr, lane), 1)
        ctr = base + row_i * lane + col_i
        mixed = ctr + seed_ref[0] * np.int32(1597334677)        # wrapping int32 mix
        bits = _hash32(mixed.astype(jnp.uint32))

        # 23 random bits -> uniform in (0, 1); all values exactly representable
        # in f32 so p never rounds to 0.0 or 1.0 (keeps log finite).
        u23 = (bits >> 9).astype(jnp.int32)
        p = (u23.astype(jnp.float32) + 0.5) * np.float32(1.0 / 8388608.0)
        noise = _normal_icdf(p)                                 # standard normal

        erase = mask_ref[...] != 0
        out_ref[0] = jnp.where(erase, noise, x_ref[0]).astype(out_ref.dtype)


# ------------------------------- host wrapper ---------------------------------

def _choose_block_rows(R, lane):
    """Largest divisor of R keeping one x block around ~512 KiB, preferring a
    multiple of 8 (or R itself) so the BlockSpec stays (8,128)-friendly."""
    target = max(8, (512 * 1024) // (lane * 4))
    if R <= target:
        return R
    for cand in range(min(target, R), 0, -1):
        if R % cand == 0 and cand % 8 == 0:
            return cand
    for cand in range(min(target, R), 0, -1):
        if R % cand == 0:
            return cand
    return R


def grid_erasing(x, mask_hw, seed):
    """x: (C, H, W) float, mask_hw: (H, W) {0,1}, seed: (1,) int32."""
    C, H, W = x.shape
    HW = H * W

    # Lane-dense layout: last dim a multiple of 128.
    lane = 512 if HW % 512 == 0 else (256 if HW % 256 == 0 else 128)
    pad = (-HW) % lane
    R = (HW + pad) // lane
    TR = _choose_block_rows(R, lane)
    num_rt = R // TR

    xf = x.reshape(C, HW)
    mf = jnp.asarray(mask_hw, jnp.int32).reshape(HW)
    if pad:
        xf = jnp.pad(xf, ((0, 0), (0, pad)))
        mf = jnp.pad(mf, (0, pad))
    x3 = xf.reshape(C, R, lane)
    m2 = mf.reshape(R, lane)

    flags = (m2.reshape(num_rt, TR * lane).max(axis=1) != 0).astype(jnp.int32)
    seed = jnp.asarray(seed, jnp.int32).reshape(1)

    grid_spec = pltpu.PrefetchScalarGridSpec(
        num_scalar_prefetch=2,
        grid=(num_rt, C),
        in_specs=[
            pl.BlockSpec((1, TR, lane), lambda r, c, sref, fref: (c, r, 0)),   # x
            pl.BlockSpec((TR, lane),    lambda r, c, sref, fref: (r, 0)),      # mask (channel-independent)
        ],
        out_specs=pl.BlockSpec((1, TR, lane), lambda r, c, sref, fref: (c, r, 0)),
    )

    out3 = pl.pallas_call(
        _grid_erasing_kernel,
        out_shape=jax.ShapeDtypeStruct((C, R, lane), x.dtype),
        grid_spec=grid_spec,
        compiler_params=pltpu.CompilerParams(
            dimension_semantics=("parallel", "parallel"),
            vmem_limit_bytes=32 * 1024 * 1024,
        ),
    )(seed, flags, x3, m2)

    out = out3.reshape(C, R * lane)
    if pad:
        out = out[:, :HW]
    return out.reshape(C, H, W)


def build_erase_mask(H, W, p, min_stride_ratio, max_stride_ratio, py_seed=0):
    """Host-side replica of the module's Python-random grid structure (deterministic)."""
    rng = pyrandom.Random(py_seed)
    stride = int(W * ((max_stride_ratio - min_stride_ratio) * rng.random() + min_stride_ratio))
    stride = max(stride, 1)
    grid_size = rng.randint(int(stride * 0.3), int(stride * 0.7))
    h0 = rng.randint(0, stride)
    w0 = rng.randint(0, stride)
    mask = np.zeros((H, W), np.int32)
    for h in range(h0, H, stride):
        for w in range(w0, W, stride):
            if rng.random() < p:                      # mirrors torch.rand(1) < p
                mask[h:h + grid_size, w:w + grid_size] = 1   # slices clamp at edges
    return mask


if __name__ == "__main__":
    # TODO(synk): the module's Python-random control flow + in-place tensor
    # mutation are resolved host-side per call (mask + seed); the tensor math
    # (normal noise + masked overwrite) runs in the Pallas kernel.
    C, H, W = 4, 32, 32
    p, min_r, max_r = 0.5, 0.1, 0.2

    key = jax.random.PRNGKey(0)
    x = jax.random.normal(key, (C, H, W), jnp.float32)

    mask = build_erase_mask(H, W, p, min_r, max_r, py_seed=0)
    seed = jnp.array([12345], jnp.int32)

    out = jax.block_until_ready(grid_erasing(x, jnp.asarray(mask), seed))

    assert out.shape == x.shape and out.dtype == x.dtype
    keep = (jnp.asarray(mask) == 0)[None, :, :]
    # Pixels outside erased grid cells are bit-exactly untouched.
    assert bool(jnp.all(jnp.where(keep, out == x, True)))
    # Erased pixels (if any) are finite normal noise.
    assert bool(jnp.all(jnp.isfinite(out)))
    print("KERNEL_OK")
</pallas_src>

<mosaic_0001>
module attributes {stable_mosaic.version = 11 : i64} {
  func.func @_grid_erasing_kernel(%arg0: i32, %arg1: i32, %arg2: memref<1xi32, #tpu.memory_space<smem>>, %arg3: memref<1xi32, #tpu.memory_space<smem>>, %arg4: memref<1x2x512xf32, #tpu.memory_space<vmem>>, %arg5: memref<2x512xi32, #tpu.memory_space<vmem>>, %arg6: memref<1x2x512xf32, #tpu.memory_space<vmem>>) attributes {dimension_semantics = [#tpu.dimension_semantics<parallel>, #tpu.dimension_semantics<parallel>], iteration_bounds = array<i64: 1, 4>, scalar_prefetch = 2 : i64, scratch_operands = 0 : i64, tpu.core_type = #tpu.core_type<tc>, window_params = [{transform_indices = @transform_0, window_bounds = array<i64: 1, 2, 512>}, {transform_indices = @transform_1, window_bounds = array<i64: 2, 512>}, {transform_indices = @transform_2, window_bounds = array<i64: 1, 2, 512>}]} {
    %0 = arith.index_cast %arg0 : i32 to index
    %1 = memref.load %arg3[%0] : memref<1xi32, #tpu.memory_space<smem>>
    %c0_i32 = arith.constant 0 : i32
    %2 = arith.cmpi ne, %1, %c0_i32 : i32
    %true = arith.constant true
    %3 = arith.xori %2, %true : i1
    %4 = arith.extui %3 : i1 to i32
    %c0_i32_0 = arith.constant 0 : i32
    %5 = arith.cmpi ne, %4, %c0_i32_0 : i32
    scf.if %5 {
      %c0 = arith.constant 0 : index
      %c0_2 = arith.constant 0 : index
      %c0_3 = arith.constant 0 : index
      %8 = vector.load %arg4[%c0, %c0_2, %c0_3] : memref<1x2x512xf32, #tpu.memory_space<vmem>>, vector<1x2x512xf32>
      %c0_4 = arith.constant 0 : index
      %c0_5 = arith.constant 0 : index
      %c0_6 = arith.constant 0 : index
      %9 = vector.load %arg6[%c0_4, %c0_5, %c0_6] : memref<1x2x512xf32, #tpu.memory_space<vmem>>, vector<1x2x512xf32>
      tpu.vector_store %arg6[%c0_4, %c0_5, %c0_6], %8 {strides = array<i32>} : memref<1x2x512xf32, #tpu.memory_space<vmem>>, vector<1x2x512xf32>,
    } else {
    }
    %6 = arith.extui %2 : i1 to i32
    %c0_i32_1 = arith.constant 0 : i32
    %7 = arith.cmpi ne, %6, %c0_i32_1 : i32
    scf.if %7 {
      %c4_i32 = arith.constant 4 : i32
      %8 = arith.muli %arg0, %c4_i32 : i32
      %9 = arith.addi %8, %arg1 : i32
      %c1024_i32 = arith.constant 1024 : i32
      %10 = arith.muli %9, %c1024_i32 : i32
      %11 = tpu.iota {dimensions = array<i32: 0>} : vector<2x512xi32>
      %12 = tpu.iota {dimensions = array<i32: 1>} : vector<2x512xi32>
      %c512_i32 = arith.constant 512 : i32
      %13 = vector.broadcast %c512_i32 : i32 to vector<2x512xi32>
      %14 = arith.muli %11, %13 : vector<2x512xi32>
      %15 = vector.broadcast %10 : i32 to vector<2x512xi32>
      %16 = arith.addi %15, %14 : vector<2x512xi32>
      %17 = arith.addi %16, %12 : vector<2x512xi32>
      %c0 = arith.constant 0 : index
      %18 = memref.load %arg2[%c0] : memref<1xi32, #tpu.memory_space<smem>>
      %c1597334677_i32 = arith.constant 1597334677 : i32
      %19 = arith.muli %18, %c1597334677_i32 : i32
      %20 = vector.broadcast %19 : i32 to vector<2x512xi32>
      %21 = arith.addi %17, %20 : vector<2x512xi32>
      %c16_i32 = arith.constant 16 : i32
      %22 = vector.broadcast %c16_i32 : i32 to vector<2x512xi32>
      %23 = arith.shrui %21, %22 : vector<2x512xi32>
      %24 = arith.xori %21, %23 : vector<2x512xi32>
      %c2146121005_i32 = arith.constant 2146121005 : i32
      %25 = vector.broadcast %c2146121005_i32 : i32 to vector<2x512xi32>
      %26 = arith.muli %24, %25 : vector<2x512xi32>
      %c15_i32 = arith.constant 15 : i32
      %27 = vector.broadcast %c15_i32 : i32 to vector<2x512xi32>
      %28 = arith.shrui %26, %27 : vector<2x512xi32>
      %29 = arith.xori %26, %28 : vector<2x512xi32>
      %c-2073254261_i32 = arith.constant -2073254261 : i32
      %30 = vector.broadcast %c-2073254261_i32 : i32 to vector<2x512xi32>
      %31 = arith.muli %29, %30 : vector<2x512xi32>
      %c16_i32_2 = arith.constant 16 : i32
      %32 = vector.broadcast %c16_i32_2 : i32 to vector<2x512xi32>
      %33 = arith.shrui %31, %32 : vector<2x512xi32>
      %34 = arith.xori %31, %33 : vector<2x512xi32>
      %c9_i32 = arith.constant 9 : i32
      %35 = vector.broadcast %c9_i32 : i32 to vector<2x512xi32>
      %36 = arith.shrui %34, %35 : vector<2x512xi32>
      %37 = arith.sitofp %36 : vector<2x512xi32> to vector<2x512xf32>
      %cst = arith.constant 5.000000e-01 : f32
      %38 = vector.broadcast %cst : f32 to vector<2x512xf32>
      %39 = arith.addf %37, %38 : vector<2x512xf32>
      %cst_3 = arith.constant 1.1920929E-7 : f32
      %40 = vector.broadcast %cst_3 : f32 to vector<2x512xf32>
      %41 = arith.mulf %39, %40 : vector<2x512xf32>
      %cst_4 = arith.constant 1.000000e+00 : f32
      %42 = vector.broadcast %cst_4 : f32 to vector<2x512xf32>
      %43 = arith.subf %42, %41 : vector<2x512xf32>
      %44 = arith.minimumf %41, %43 : vector<2x512xf32>
      %cst_5 = arith.constant 9.99999996E-13 : f32
      %45 = vector.broadcast %cst_5 : f32 to vector<2x512xf32>
      %46 = arith.maximumf %44, %45 : vector<2x512xf32>
      %47 = math.log %46 : vector<2x512xf32>
      %cst_6 = arith.constant -2.000000e+00 : f32
      %48 = vector.broadcast %cst_6 : f32 to vector<2x512xf32>
      %49 = arith.mulf %48, %47 : vector<2x512xf32>
      %50 = math.sqrt %49 : vector<2x512xf32>
      %cst_7 = arith.constant -0.0077848942 : f32
      %51 = vector.broadcast %cst_7 : f32 to vector<2x512xf32>
      %52 = arith.mulf %51, %50 : vector<2x512xf32>
      %cst_8 = arith.constant -0.322396457 : f32
      %53 = vector.broadcast %cst_8 : f32 to vector<2x512xf32>
      %54 = arith.addf %52, %53 : vector<2x512xf32>
      %55 = arith.mulf %54, %50 : vector<2x512xf32>
      %cst_9 = arith.constant -2.40075827 : f32
      %56 = vector.broadcast %cst_9 : f32 to vector<2x512xf32>
      %57 = arith.addf %55, %56 : vector<2x512xf32>
      %58 = arith.mulf %57, %50 : vector<2x512xf32>
      %cst_10 = arith.constant -2.54973245 : f32
      %59 = vector.broadcast %cst_10 : f32 to vector<2x512xf32>
      %60 = arith.addf %58, %59 : vector<2x512xf32>
      %61 = arith.mulf %60, %50 : vector<2x512xf32>
      %cst_11 = arith.constant 4.37466431 : f32
      %62 = vector.broadcast %cst_11 : f32 to vector<2x512xf32>
      %63 = arith.addf %61, %62 : vector<2x512xf32>
      %64 = arith.mulf %63, %50 : vector<2x512xf32>
      %cst_12 = arith.constant 2.938164 : f32
      %65 = vector.broadcast %cst_12 : f32 to vector<2x512xf32>
      %66 = arith.addf %64, %65 : vector<2x512xf32>
      %cst_13 = arith.constant 0.00778469583 : f32
      %67 = vector.broadcast %cst_13 : f32 to vector<2x512xf32>
      %68 = arith.mulf %67, %50 : vector<2x512xf32>
      %cst_14 = arith.constant 0.322467119 : f32
      %69 = vector.broadcast %cst_14 : f32 to vector<2x512xf32>
      %70 = arith.addf %68, %69 : vector<2x512xf32>
      %71 = arith.mulf %70, %50 : vector<2x512xf32>
      %cst_15 = arith.constant 2.44513416 : f32
      %72 = vector.broadcast %cst_15 : f32 to vector<2x512xf32>
      %73 = arith.addf %71, %72 : vector<2x512xf32>
      %74 = arith.mulf %73, %50 : vector<2x512xf32>
      %cst_16 = arith.constant 3.7544086 : f32
      %75 = vector.broadcast %cst_16 : f32 to vector<2x512xf32>
      %76 = arith.addf %74, %75 : vector<2x512xf32>
      %77 = arith.mulf %76, %50 : vector<2x512xf32>
      %cst_17 = arith.constant 1.000000e+00 : f32
      %78 = vector.broadcast %cst_17 : f32 to vector<2x512xf32>
      %79 = arith.addf %77, %78 : vector<2x512xf32>
      %80 = arith.divf %66, %79 : vector<2x512xf32>
      %cst_18 = arith.constant 5.000000e-01 : f32
      %81 = vector.broadcast %cst_18 : f32 to vector<2x512xf32>
      %82 = arith.subf %46, %81 : vector<2x512xf32>
      %83 = arith.mulf %82, %82 : vector<2x512xf32>
      %cst_19 = arith.constant -39.6968307 : f32
      %84 = vector.broadcast %cst_19 : f32 to vector<2x512xf32>
      %85 = arith.mulf %84, %83 : vector<2x512xf32>
      %cst_20 = arith.constant 220.946106 : f32
      %86 = vector.broadcast %cst_20 : f32 to vector<2x512xf32>
      %87 = arith.addf %85, %86 : vector<2x512xf32>
      %88 = arith.mulf %87, %83 : vector<2x512xf32>
      %cst_21 = arith.constant -275.928497 : f32
      %89 = vector.broadcast %cst_21 : f32 to vector<2x512xf32>
      %90 = arith.addf %88, %89 : vector<2x512xf32>
      %91 = arith.mulf %90, %83 : vector<2x512xf32>
      %cst_22 = arith.constant 138.357758 : f32
      %92 = vector.broadcast %cst_22 : f32 to vector<2x512xf32>
      %93 = arith.addf %91, %92 : vector<2x512xf32>
      %94 = arith.mulf %93, %83 : vector<2x512xf32>
      %cst_23 = arith.constant -30.6647987 : f32
      %95 = vector.broadcast %cst_23 : f32 to vector<2x512xf32>
      %96 = arith.addf %94, %95 : vector<2x512xf32>
      %97 = arith.mulf %96, %83 : vector<2x512xf32>
      %cst_24 = arith.constant 2.50662827 : f32
      %98 = vector.broadcast %cst_24 : f32 to vector<2x512xf32>
      %99 = arith.addf %97, %98 : vector<2x512xf32>
      %100 = arith.mulf %99, %82 : vector<2x512xf32>
      %cst_25 = arith.constant -54.4760971 : f32
      %101 = vector.broadcast %cst_25 : f32 to vector<2x512xf32>
      %102 = arith.mulf %101, %83 : vector<2x512xf32>
      %cst_26 = arith.constant 161.585831 : f32
      %103 = vector.broadcast %cst_26 : f32 to vector<2x512xf32>
      %104 = arith.addf %102, %103 : vector<2x512xf32>
      %105 = arith.mulf %104, %83 : vector<2x512xf32>
      %cst_27 = arith.constant -155.698975 : f32
      %106 = vector.broadcast %cst_27 : f32 to vector<2x512xf32>
      %107 = arith.addf %105, %106 : vector<2x512xf32>
      %108 = arith.mulf %107, %83 : vector<2x512xf32>
      %cst_28 = arith.constant 66.8013153 : f32
      %109 = vector.broadcast %cst_28 : f32 to vector<2x512xf32>
      %110 = arith.addf %108, %109 : vector<2x512xf32>
      %111 = arith.mulf %110, %83 : vector<2x512xf32>
      %cst_29 = arith.constant -13.2806816 : f32
      %112 = vector.broadcast %cst_29 : f32 to vector<2x512xf32>
      %113 = arith.addf %111, %112 : vector<2x512xf32>
      %114 = arith.mulf %113, %83 : vector<2x512xf32>
      %cst_30 = arith.constant 1.000000e+00 : f32
      %115 = vector.broadcast %cst_30 : f32 to vector<2x512xf32>
      %116 = arith.addf %114, %115 : vector<2x512xf32>
      %117 = arith.divf %100, %116 : vector<2x512xf32>
      %cst_31 = arith.constant 2.425000e-02 : f32
      %118 = vector.broadcast %cst_31 : f32 to vector<2x512xf32>
      %119 = arith.cmpf olt, %46, %118 : vector<2x512xf32>
      %120 = arith.select %119, %80, %117 : vector<2x512xi1>, vector<2x512xf32>
      %cst_32 = arith.constant 5.000000e-01 : f32
      %121 = vector.broadcast %cst_32 : f32 to vector<2x512xf32>
      %122 = arith.cmpf ogt, %41, %121 : vector<2x512xf32>
      %cst_33 = arith.constant 0.000000e+00 : f32
      %123 = vector.broadcast %cst_33 : f32 to vector<2x512xf32>
      %124 = arith.subf %123, %120 : vector<2x512xf32>
      %125 = arith.select %122, %124, %120 : vector<2x512xi1>, vector<2x512xf32>
      %c0_34 = arith.constant 0 : index
      %c0_35 = arith.constant 0 : index
      %126 = vector.load %arg5[%c0_34, %c0_35] : memref<2x512xi32, #tpu.memory_space<vmem>>, vector<2x512xi32>
      %c0_i32_36 = arith.constant 0 : i32
      %127 = vector.broadcast %c0_i32_36 : i32 to vector<2x512xi32>
      %128 = arith.cmpi ne, %126, %127 : vector<2x512xi32>
      %c0_37 = arith.constant 0 : index
      %c0_38 = arith.constant 0 : index
      %c0_39 = arith.constant 0 : index
      %129 = vector.load %arg4[%c0_37, %c0_38, %c0_39] : memref<1x2x512xf32, #tpu.memory_space<vmem>>, vector<1x2x512xf32>
      %130 = vector.shape_cast %129 : vector<1x2x512xf32> to vector<2x512xf32>
      %131 = arith.select %128, %125, %130 : vector<2x512xi1>, vector<2x512xf32>
      %c0_40 = arith.constant 0 : index
      %c0_41 = arith.constant 0 : index
      %c0_42 = arith.constant 0 : index
      %132 = vector.load %arg6[%c0_40, %c0_41, %c0_42] : memref<1x2x512xf32, #tpu.memory_space<vmem>>, vector<1x2x512xf32>
      %133 = vector.shape_cast %132 : vector<1x2x512xf32> to vector<2x512xf32>
      %134 = vector.shape_cast %131 : vector<2x512xf32> to vector<1x2x512xf32>
      tpu.vector_store %arg6[%c0_40, %c0_41, %c0_42], %134 {strides = array<i32>} : memref<1x2x512xf32, #tpu.memory_space<vmem>>, vector<1x2x512xf32>,
    } else {
    }
    return
  }
  func.func @transform_0(%arg0: i32, %arg1: i32, %arg2: memref<1xi32, #tpu.memory_space<smem>>, %arg3: memref<1xi32, #tpu.memory_space<smem>>) -> (i32, i32, i32) {
    %c0_i32 = arith.constant 0 : i32
    %c0_i32_0 = arith.constant 0 : i32
    return %arg1, %arg0, %c0_i32 : i32, i32, i32
  }
  func.func @transform_1(%arg0: i32, %arg1: i32, %arg2: memref<1xi32, #tpu.memory_space<smem>>, %arg3: memref<1xi32, #tpu.memory_space<smem>>) -> (i32, i32) {
    %c0_i32 = arith.constant 0 : i32
    %c0_i32_0 = arith.constant 0 : i32
    return %arg0, %c0_i32 : i32, i32
  }
  func.func @transform_2(%arg0: i32, %arg1: i32, %arg2: memref<1xi32, #tpu.memory_space<smem>>, %arg3: memref<1xi32, #tpu.memory_space<smem>>) -> (i32, i32, i32) {
    %c0_i32 = arith.constant 0 : i32
    %c0_i32_0 = arith.constant 0 : i32
    return %arg1, %arg0, %c0_i32 : i32, i32, i32
  }
}

</mosaic_0001>

<llo_original>
// kernel: tpu_custom_call.1
$region0: #{tpu_custom_call.1}
  #allocation0 [shape = 'u32[]', space=smem, size = 0x4, offset = 0x4, fixed_abs, tag = 'smem constant byte address 0x4 - core index']
  #allocation1 [shape = 'u32[144,128]{1,0:T(1,128)}', space=vmem, size = 0x12000, scoped, tag = 'internal scratch']
  #allocation2 [shape = 's32[1]{0}', space=sflag, size = 0x4, scoped, tag = 'scoped memory for tpu_custom_call.1']
  #allocation3 [shape = 's32[1]{0:T(128)S(6)}', space=smem, size = 0x200, scoped, tag = 'prefetched SMEM operand 0']
  #allocation4 [shape = 's32[1]{0:T(128)S(6)}', space=smem, size = 0x200, scoped, tag = 'prefetched SMEM operand 1']
  %s0 = inlined_call_operand.<no memory space> [shape: s32[1], index: 0, kind: input, shape index: {}]
  %s1 = inlined_call_operand.<no memory space> [shape: s32[1], index: 1, kind: input, shape index: {}]
  %s2 = inlined_call_operand.hbm [shape: f32[4,2,512], index: 2, kind: input, shape index: {}]
  %s3 = inlined_call_operand.vmem [shape: s32[2,512], index: 3, kind: input, shape index: {}]
  %s4 = inlined_call_operand.hbm [shape: f32[4,2,512], index: 4, kind: output, shape index: {}]
  %s5 = sld [smem:[#allocation0]]
  $region53: #{tpu_custom_call.1} parent=0
    _
  %s7 = ssub.s32 1, %s5
  %s8 = scalar_select 0, %s7, %s5
  %9 = sst [smem:[#allocation3]] %s0
  %10 = sst [smem:[#allocation4]] %s1
  $region1: #{tpu_custom_call.1} parent=0
    #allocation5 [shape = 'u8[8192]{0}', space=vmem, size = 0x2000, scoped, tag = 'input window, operand 2']
    #allocation6 [shape = 's32[2]{0}', space=sflag, size = 0x8, scoped, tag = 'scoped memory for tpu_custom_call.1']
    #allocation7 [shape = 's32[2]{0}', space=sflag, size = 0x8, scoped, tag = 'scoped memory for tpu_custom_call.1']
    #allocation8 [shape = 'u8[8192]{0}', space=vmem, size = 0x2000, scoped, tag = 'output window, operand 0']
    %11 = vsyncpa [#allocation6], 0
    %s12 = scalar_lea.sflag [#allocation6], 1
    %13 = vsyncpa %s12, 0
    %14 = vsyncpa [#allocation7], 0
    %s15 = scalar_lea.sflag [#allocation7], 1
    %16 = vsyncpa %s15, 0
    loop: start=0, step=1, limit=6
    $region2: #{tpu_custom_call.1} parent=1 // loop_pre_header
      _
    $region3: #{tpu_custom_call.1} parent=1 // loop_header
      %s18 = sphi 0, %s22
      %p19 = scmp.ge.s32.totalorder %s18, 6
      %s25 = sphi 0, %s37
      %s26 = sphi 0, %s33
      %s27 = sphi 0, %s25
      %s28 = sphi 0, %s26
      %s29 = sphi 0, %s27
      %s30 = sphi 0, %s28
      %s42 = sphi 0, %s44
      %s45 = sphi 0, %s42
      %s46 = sphi 0, %s45
      %s62 = sphi 0, %s46
      %s68 = sphi 0, %s70
      %s71 = sphi 0, %s68
      %s72 = sphi 0, %s71
      %s88 = sphi 0, %s72
      %s96 = sphi 0, %s98
      %s99 = sphi 0, %s96
      %s100 = sphi 0, %s99
      %s116 = sphi 0, %s100
    $region4: #{tpu_custom_call.1} parent=1 // loop_header_branch
      %21 = sbr.rel (%p19) target = $region8
    $region5: #{tpu_custom_call.1} parent=1 // loop_body
      %s23 = ssub.s32 %s18, 1
      %s24 = ssub.s32 %s18, 2
      %s31 = sadd.s32 1, %s26
      %p32 = scmp.ge.s32.totalorder %s31, 4
      %s33 = scalar_select %p32, 0, %s31
      %s34 = sadd.s32 1, %s25
      %s35 = scalar_select %p32, %s34, %s25
      %p36 = scmp.ge.s32.totalorder %s35, 1
      %s37 = scalar_select %p36, 0, %s35
      %s38 = ssub.s32 %s26, %s33
      %s39 = ssub.s32 %s25, %s37
      %s40 = sor.u32 %s38, %s39
      %p41 = scmp.eq.s32.totalorder %s40, 0
      %s43 = sadd.s32 %s42, 1
      %s44 = scalar_select %p41, %s42, %s43
      %p47 = pneg %p41
      %p48 = scmp.eq.s32.totalorder %s18, 3
      %p49 = por %p47, %p48
      %p50 = scmp.ne.s32.totalorder %s42, %s45
      %p51 = scmp.eq.s32.totalorder %s18, 0
      %p52 = por %p50, %p51
      %p53 = scmp.ne.s32.totalorder %s42, %s45
      %p54 = scmp.eq.s32.totalorder %s23, 3
      %p55 = por %p53, %p54
      %p56 = scmp.ne.s32.totalorder %s45, %s46
      %p57 = scmp.eq.s32.totalorder %s23, 0
      %p58 = por %p56, %p57
      %p59 = scmp.ne.s32.totalorder %s45, %s46
      %p60 = scmp.eq.s32.totalorder %s24, 3
      %p61 = por %p59, %p60
      %p63 = scmp.ne.s32.totalorder %s46, %s62
      %p64 = scmp.eq.s32.totalorder %s24, 0
      %p65 = por %p63, %p64
      %s66 = ssub.s32 %s25, %s37
      %p67 = scmp.eq.s32.totalorder %s66, 0
      %s69 = sadd.s32 %s68, 1
      %s70 = scalar_select %p67, %s68, %s69
      %p73 = pneg %p67
      %p74 = scmp.eq.s32.totalorder %s18, 3
      %p75 = por %p73, %p74
      %p76 = scmp.ne.s32.totalorder %s68, %s71
      %p77 = scmp.eq.s32.totalorder %s18, 0
      %p78 = por %p76, %p77
      %p79 = scmp.ne.s32.totalorder %s68, %s71
      %p80 = scmp.eq.s32.totalorder %s23, 3
      %p81 = por %p79, %p80
      %p82 = scmp.ne.s32.totalorder %s71, %s72
      %p83 = scmp.eq.s32.totalorder %s23, 0
      %p84 = por %p82, %p83
      %p85 = scmp.ne.s32.totalorder %s71, %s72
      %p86 = scmp.eq.s32.totalorder %s24, 3
      %p87 = por %p85, %p86
      %p89 = scmp.ne.s32.totalorder %s72, %s88
      %p90 = scmp.eq.s32.totalorder %s24, 0
      %p91 = por %p89, %p90
      %s92 = ssub.s32 %s26, %s33
      %s93 = ssub.s32 %s25, %s37
      %s94 = sor.u32 %s92, %s93
      %p95 = scmp.eq.s32.totalorder %s94, 0
      %s97 = sadd.s32 %s96, 1
      %s98 = scalar_select %p95, %s96, %s97
      %p101 = pneg %p95
      %p102 = scmp.eq.s32.totalorder %s18, 3
      %p103 = por %p101, %p102
      %p104 = scmp.ne.s32.totalorder %s96, %s99
      %p105 = scmp.eq.s32.totalorder %s18, 0
      %p106 = por %p104, %p105
      %p107 = scmp.ne.s32.totalorder %s96, %s99
      %p108 = scmp.eq.s32.totalorder %s23, 3
      %p109 = por %p107, %p108
      %p110 = scmp.ne.s32.totalorder %s99, %s100
      %p111 = scmp.eq.s32.totalorder %s23, 0
      %p112 = por %p110, %p111
      %p113 = scmp.ne.s32.totalorder %s99, %s100
      %p114 = scmp.eq.s32.totalorder %s24, 3
      %p115 = por %p113, %p114
      %p117 = scmp.ne.s32.totalorder %s100, %s116
      %p118 = scmp.eq.s32.totalorder %s24, 0
      %p119 = por %p117, %p118
      %p120 = scmp.le.s32.totalorder 1, %s18
      %p121 = scmp.lt.s32.totalorder %s18, 5
      %p122 = pnand %p120, %p121
      %p123 = pneg %p122
      // Predicated region
      $region9: #{tpu_custom_call.1} parent=5 // pred_check
        _
      $region10: #{tpu_custom_call.1} parent=5 // pred_check_branch
        %125 = sbr.rel (%p122) target = $region12
      $region11: #{tpu_custom_call.1} parent=5 // pred_region
        %s126 = ssub.s32 %s18, 1
        // Predicated region
        $region13: #{tpu_custom_call.1} parent=11 // pred_check
          %p127 = pneg %p84
        $region14: #{tpu_custom_call.1} parent=11 // pred_check_branch
          %129 = sbr.rel (%p127) target = $region16
        $region15: #{tpu_custom_call.1} parent=11 // pred_region
          %p130 = scmp.lt.s32.totalorder %s27, 0
          %s131 = scalar_select %p130, %s27, 0
          %s132 = smul.addr %s131, 4
          %s133 = smul.addr %s132, 2
          %s134 = scalar_lea.vmem %s3, %s133
        $region16: #{tpu_custom_call.1} parent=11 // pred_fallthru
          _
      $region12: #{tpu_custom_call.1} parent=5 // pred_fallthru
        _
      %p135 = scmp.lt.s32.totalorder %s18, 4
      // Predicated region
      $region17: #{tpu_custom_call.1} parent=5 // pred_check
        %p136 = pneg %p135
      $region18: #{tpu_custom_call.1} parent=5 // pred_check_branch
        %138 = sbr.rel (%p136) target = $region20
      $region19: #{tpu_custom_call.1} parent=5 // pred_region
        // Predicated region
        $region21: #{tpu_custom_call.1} parent=19 // pred_check
          %p139 = pneg %p52
        $region22: #{tpu_custom_call.1} parent=19 // pred_check_branch
          %141 = sbr.rel (%p139) target = $region24
        $region23: #{tpu_custom_call.1} parent=19 // pred_region
          %s142 = sand.u32 %s42, 1
          %s143 = scalar_lea.sflag [#allocation6], %s142
          %s144 = sand.u32 %s42, 1
          %s145 = smul.addr %s144, 8
          %s146 = scalar_lea.vmem [#allocation5], %s145
          %s148 = ssub.s32 128, 128
          %149 = vsyncadd %s143, %s148
          %s150 = smul.addr %s25, 4
          %s151 = smul.addr %s26, 4
          %s152 = sadd.s32 %s150, %s151
          %s153 = smul.addr %s152, 32
          %s154 = scalar_lea.hbm %s2, %s153
          %s156 = sshll.u32 %s146, 4
          %s157 = int_to_ptr.vmem [resolvable:$true] %s156
          %159 = dma.hbm_to_vmem [thread:$0]  %s154, 128, %s157, %s143
        $region24: #{tpu_custom_call.1} parent=19 // pred_fallthru
          _
      $region20: #{tpu_custom_call.1} parent=5 // pred_fallthru
        _
      %p160 = scmp.le.s32.totalorder 1, %s18
      %p161 = scmp.lt.s32.totalorder %s18, 5
      %p162 = pnand %p160, %p161
      %p163 = pneg %p162
      // Predicated region
      $region25: #{tpu_custom_call.1} parent=5 // pred_check
        _
      $region26: #{tpu_custom_call.1} parent=5 // pred_check_branch
        %165 = sbr.rel (%p162) target = $region28
      $region27: #{tpu_custom_call.1} parent=5 // pred_region
        %s166 = ssub.s32 %s18, 1
        %s167 = sand.u32 %s45, 1
        %s168 = scalar_lea.sflag [#allocation6], %s167
        %s169 = sand.u32 %s45, 1
        %s170 = smul.addr %s169, 8
        %s171 = scalar_lea.vmem [#allocation5], %s170
        // Predicated region
        $region29: #{tpu_custom_call.1} parent=27 // pred_check
          %p172 = pneg %p58
        $region30: #{tpu_custom_call.1} parent=27 // pred_check_branch
          %174 = sbr.rel (%p172) target = $region32
        $region31: #{tpu_custom_call.1} parent=27 // pred_region
          %175 = dma.done %s168, 128
        $region32: #{tpu_custom_call.1} parent=27 // pred_fallthru
          _
        %s176 = sand.u32 %s45, 1
        %s177 = scalar_lea.sflag [#allocation6], %s176
        %s178 = sand.u32 %s45, 1
        %s179 = smul.addr %s178, 8
        %s180 = scalar_lea.vmem [#allocation5], %s179
        %p181 = pneg %p58
        %p182 = pneg %p55
        %p183 = scmp.lt.s32.totalorder %s27, 0
        %s184 = scalar_select %p183, %s27, 0
        %s185 = smul.addr %s184, 4
        %s186 = smul.addr %s185, 2
        %s187 = scalar_lea.vmem %s3, %s186
        %p188 = pneg %p84
        %p189 = pneg %p81
        %p190 = pneg %p112
        %p191 = pneg %p109
        %s192 = sand.u32 %s99, 1
        %s193 = scalar_lea.sflag [#allocation7], %s192
        %s194 = sand.u32 %s99, 1
        %s195 = smul.addr %s194, 8
        %s196 = scalar_lea.vmem [#allocation8], %s195
        %p197 = scmp.lt.s32.totalorder %s27, 0
        %s198 = scalar_select %p197, %s27, 0
        %s199 = smul.addr %s198, 4
        %s200 = smul.addr %s199, 2
        %s201 = scalar_lea.vmem %s3, %s200
        %s202 = sld [smem:[#allocation4 + %s27]]
        %p203 = scmp.ne.s32.totalorder %s202, 0
        %p204 = scmp.eq.s32.totalorder %s202, 0
        // Predicated region
        $region33: #{tpu_custom_call.1} parent=27 // pred_check
          %p205 = pneg %p204
        $region34: #{tpu_custom_call.1} parent=27 // pred_check_branch
          %207 = sbr.rel (%p205) target = $region36
        $region35: #{tpu_custom_call.1} parent=27 // pred_region
          %v208 = vld [vmem:[%s171] sm:$0xff]
          %209 = vst [vmem:[%s196] sm:$0xff] %v208
        $region36: #{tpu_custom_call.1} parent=27 // pred_fallthru
          _
        // Predicated region
        $region37: #{tpu_custom_call.1} parent=27 // pred_check
          %p210 = pneg %p203
        $region38: #{tpu_custom_call.1} parent=27 // pred_check_branch
          %212 = sbr.rel (%p210) target = $region40
        $region39: #{tpu_custom_call.1} parent=27 // pred_region
          %s213 = smul.u32 %s27, 4
          %s214 = sadd.s32 %s213, %s28
          %s215 = smul.u32 %s214, 1024
          %v216 = vlaneseq
          %v217 = vshrl.u32 %v216, 7
          %v218 = vlaneseq
          %v219 = vand.u32 %v218, 127
          %v220 = vadd.s32 %v219, 128
          %v221 = vadd.s32 %v219, 256
          %v222 = vadd.s32 %v219, 384
          %v223 = vmul.u32 %v217, 512
          %v224 = vstv %s215
          %v225 = vadd.s32 %v224, %v223
          %v226 = vadd.s32 %v225, %v219
          %v227 = vadd.s32 %v225, %v220
          %v228 = vadd.s32 %v225, %v221
          %v229 = vadd.s32 %v225, %v222
          %s230 = sld [smem:[#allocation3]]
          %s231 = smul.u32 %s230, 1597334677
          %v232 = vstv %s231
          %v233 = vadd.s32 %v226, %v232
          %v234 = vadd.s32 %v227, %v232
          %v235 = vadd.s32 %v228, %v232
          %v236 = vadd.s32 %v229, %v232
          %v237 = vshrl.u32 %v233, 16
          %v238 = vshrl.u32 %v234, 16
          %v239 = vshrl.u32 %v235, 16
          %v240 = vshrl.u32 %v236, 16
          %v241 = vxor.u32 %v233, %v237
          %v242 = vxor.u32 %v234, %v238
          %v243 = vxor.u32 %v235, %v239
          %v244 = vxor.u32 %v236, %v240
          %v245 = vmul.u32 %v241, 2146121005
          %v246 = vmul.u32 %v242, 2146121005
          %v247 = vmul.u32 %v243, 2146121005
          %v248 = vmul.u32 %v244, 2146121005
          %v249 = vshrl.u32 %v245, 15
          %v250 = vshrl.u32 %v246, 15
          %v251 = vshrl.u32 %v247, 15
          %v252 = vshrl.u32 %v248, 15
          %v253 = vxor.u32 %v245, %v249
          %v254 = vxor.u32 %v246, %v250
          %v255 = vxor.u32 %v247, %v251
          %v256 = vxor.u32 %v248, %v252
          %v257 = vmul.u32 %v253, 2221713035
          %v258 = vmul.u32 %v254, 2221713035
          %v259 = vmul.u32 %v255, 2221713035
          %v260 = vmul.u32 %v256, 2221713035
          %v261 = vshrl.u32 %v257, 16
          %v262 = vshrl.u32 %v258, 16
          %v263 = vshrl.u32 %v259, 16
          %v264 = vshrl.u32 %v260, 16
          %v265 = vxor.u32 %v257, %v261
          %v266 = vxor.u32 %v258, %v262
          %v267 = vxor.u32 %v259, %v263
          %v268 = vxor.u32 %v260, %v264
          %v269 = vshrl.u32 %v265, 9
          %v270 = vshrl.u32 %v266, 9
          %v271 = vshrl.u32 %v267, 9
          %v272 = vshrl.u32 %v268, 9
          %v273 = vcvt.s32.f32 %v269
          %v274 = vcvt.s32.f32 %v270
          %v275 = vcvt.s32.f32 %v271
          %v276 = vcvt.s32.f32 %v272
          %v277 = vadd.f32 %v273, 0.5
          %v278 = vadd.f32 %v274, 0.5
          %v279 = vadd.f32 %v275, 0.5
          %v280 = vadd.f32 %v276, 0.5
          %v281 = vmul.f32 %v277, 1.1920929e-07
          %v282 = vmul.f32 %v278, 1.1920929e-07
          %v283 = vmul.f32 %v279, 1.1920929e-07
          %v284 = vmul.f32 %v280, 1.1920929e-07
          %v285 = vsub.f32 1.0, %v281
          %v286 = vsub.f32 1.0, %v282
          %v287 = vsub.f32 1.0, %v283
          %v288 = vsub.f32 1.0, %v284
          %v289 = vmin.f32 %v281, %v285
          %v290 = vmin.f32 %v282, %v286
          %v291 = vmin.f32 %v283, %v287
          %v292 = vmin.f32 %v284, %v288
          %v293 = vmax.f32 %v289, 1e-12
          %v294 = vmax.f32 %v290, 1e-12
          %v295 = vmax.f32 %v291, 1e-12
          %v296 = vmax.f32 %v292, 1e-12
          %v297 = vlog2.pop %v293
          %v298 = vmul.f32 %v297, 0.6931472
          %v299 = vlog2.pop %v294
          %v300 = vmul.f32 %v299, 0.6931472
          %v301 = vlog2.pop %v295
          %v302 = vmul.f32 %v301, 0.6931472
          %v303 = vlog2.pop %v296
          %v304 = vmul.f32 %v303, 0.6931472
          %v305 = vmul.f32 %v298, -2.0
          %v306 = vmul.f32 %v300, -2.0
          %v307 = vmul.f32 %v302, -2.0
          %v308 = vmul.f32 %v304, -2.0
          %v309 = vrsqrt.pop %v305
          %v310 = vmul.f32 %v305, %v309
          %vm311 = vcmp.eq.f32.partialorder %v305, inf
          %v312 = vsel %vm311, %v305, %v310
          %vm313 = vcmp.eq.f32.partialorder %v305, 0.0
          %v314 = vand.u32 %v305, 2147483648
          %v315 = vsel %vm313, %v314, %v312
          %v316 = vrsqrt.pop %v306
          %v317 = vmul.f32 %v306, %v316
          %vm318 = vcmp.eq.f32.partialorder %v306, inf
          %v319 = vsel %vm318, %v306, %v317
          %vm320 = vcmp.eq.f32.partialorder %v306, 0.0
          %v321 = vand.u32 %v306, 2147483648
          %v322 = vsel %vm320, %v321, %v319
          %v323 = vrsqrt.pop %v307
          %v324 = vmul.f32 %v307, %v323
          %vm325 = vcmp.eq.f32.partialorder %v307, inf
          %v326 = vsel %vm325, %v307, %v324
          %vm327 = vcmp.eq.f32.partialorder %v307, 0.0
          %v328 = vand.u32 %v307, 2147483648
          %v329 = vsel %vm327, %v328, %v326
          %v330 = vrsqrt.pop %v308
          %v331 = vmul.f32 %v308, %v330
          %vm332 = vcmp.eq.f32.partialorder %v308, inf
          %v333 = vsel %vm332, %v308, %v331
          %vm334 = vcmp.eq.f32.partialorder %v308, 0.0
          %v335 = vand.u32 %v308, 2147483648
          %v336 = vsel %vm334, %v335, %v333
          %v337 = vmul.f32 %v315, -0.007784894
          %v338 = vmul.f32 %v322, -0.007784894
          %v339 = vmul.f32 %v329, -0.007784894
          %v340 = vmul.f32 %v336, -0.007784894
          %v341 = vadd.f32 %v337, -0.32239646
          %v342 = vadd.f32 %v338, -0.32239646
          %v343 = vadd.f32 %v339, -0.32239646
          %v344 = vadd.f32 %v340, -0.32239646
          %v345 = vmul.f32 %v341, %v315
          %v346 = vmul.f32 %v342, %v322
          %v347 = vmul.f32 %v343, %v329
          %v348 = vmul.f32 %v344, %v336
          %v349 = vadd.f32 %v345, -2.4007583
          %v350 = vadd.f32 %v346, -2.4007583
          %v351 = vadd.f32 %v347, -2.4007583
          %v352 = vadd.f32 %v348, -2.4007583
          %v353 = vmul.f32 %v349, %v315
          %v354 = vmul.f32 %v350, %v322
          %v355 = vmul.f32 %v351, %v329
          %v356 = vmul.f32 %v352, %v336
          %v357 = vadd.f32 %v353, -2.5497324
          %v358 = vadd.f32 %v354, -2.5497324
          %v359 = vadd.f32 %v355, -2.5497324
          %v360 = vadd.f32 %v356, -2.5497324
          %v361 = vmul.f32 %v357, %v315
          %v362 = vmul.f32 %v358, %v322
          %v363 = vmul.f32 %v359, %v329
          %v364 = vmul.f32 %v360, %v336
          %v365 = vadd.f32 %v361, 4.3746643
          %v366 = vadd.f32 %v362, 4.3746643
          %v367 = vadd.f32 %v363, 4.3746643
          %v368 = vadd.f32 %v364, 4.3746643
          %v369 = vmul.f32 %v365, %v315
          %v370 = vmul.f32 %v366, %v322
          %v371 = vmul.f32 %v367, %v329
          %v372 = vmul.f32 %v368, %v336
          %v373 = vadd.f32 %v369, 2.938164
          %v374 = vadd.f32 %v370, 2.938164
          %v375 = vadd.f32 %v371, 2.938164
          %v376 = vadd.f32 %v372, 2.938164
          %v377 = vmul.f32 %v315, 0.007784696
          %v378 = vmul.f32 %v322, 0.007784696
          %v379 = vmul.f32 %v329, 0.007784696
          %v380 = vmul.f32 %v336, 0.007784696
          %v381 = vadd.f32 %v377, 0.32246712
          %v382 = vadd.f32 %v378, 0.32246712
          %v383 = vadd.f32 %v379, 0.32246712
          %v384 = vadd.f32 %v380, 0.32246712
          %v385 = vmul.f32 %v381, %v315
          %v386 = vmul.f32 %v382, %v322
          %v387 = vmul.f32 %v383, %v329
          %v388 = vmul.f32 %v384, %v336
          %v389 = vadd.f32 %v385, 2.4451342
          %v390 = vadd.f32 %v386, 2.4451342
          %v391 = vadd.f32 %v387, 2.4451342
          %v392 = vadd.f32 %v388, 2.4451342
          %v393 = vmul.f32 %v389, %v315
          %v394 = vmul.f32 %v390, %v322
          %v395 = vmul.f32 %v391, %v329
          %v396 = vmul.f32 %v392, %v336
          %v397 = vadd.f32 %v393, 3.7544086
          %v398 = vadd.f32 %v394, 3.7544086
          %v399 = vadd.f32 %v395, 3.7544086
          %v400 = vadd.f32 %v396, 3.7544086
          %v401 = vmul.f32 %v397, %v315
          %v402 = vmul.f32 %v398, %v322
          %v403 = vmul.f32 %v399, %v329
          %v404 = vmul.f32 %v400, %v336
          %v405 = vadd.f32 %v401, 1.0
          %v406 = vadd.f32 %v402, 1.0
          %v407 = vadd.f32 %v403, 1.0
          %v408 = vadd.f32 %v404, 1.0
          %v409 = vrcp.pop %v405
          %v410 = vmul.f32 %v373, %v409
          %v411 = vrcp.pop %v406
          %v412 = vmul.f32 %v374, %v411
          %v413 = vrcp.pop %v407
          %v414 = vmul.f32 %v375, %v413
          %v415 = vrcp.pop %v408
          %v416 = vmul.f32 %v376, %v415
          %v417 = vsub.f32 %v293, 0.5
          %v418 = vsub.f32 %v294, 0.5
          %v419 = vsub.f32 %v295, 0.5
          %v420 = vsub.f32 %v296, 0.5
          %v421 = vmul.f32 %v417, %v417
          %v422 = vmul.f32 %v418, %v418
          %v423 = vmul.f32 %v419, %v419
          %v424 = vmul.f32 %v420, %v420
          %v425 = vmul.f32 %v421, -39.69683
          %v426 = vmul.f32 %v422, -39.69683
          %v427 = vmul.f32 %v423, -39.69683
          %v428 = vmul.f32 %v424, -39.69683
          %v429 = vadd.f32 %v425, 220.9461
          %v430 = vadd.f32 %v426, 220.9461
          %v431 = vadd.f32 %v427, 220.9461
          %v432 = vadd.f32 %v428, 220.9461
          %v433 = vmul.f32 %v429, %v421
          %v434 = vmul.f32 %v430, %v422
          %v435 = vmul.f32 %v431, %v423
          %v436 = vmul.f32 %v432, %v424
          %v437 = vadd.f32 %v433, -275.9285
          %v438 = vadd.f32 %v434, -275.9285
          %v439 = vadd.f32 %v435, -275.9285
          %v440 = vadd.f32 %v436, -275.9285
          %v441 = vmul.f32 %v437, %v421
          %v442 = vmul.f32 %v438, %v422
          %v443 = vmul.f32 %v439, %v423
          %v444 = vmul.f32 %v440, %v424
          %v445 = vadd.f32 %v441, 138.35776
          %v446 = vadd.f32 %v442, 138.35776
          %v447 = vadd.f32 %v443, 138.35776
          %v448 = vadd.f32 %v444, 138.35776
          %v449 = vmul.f32 %v445, %v421
          %v450 = vmul.f32 %v446, %v422
          %v451 = vmul.f32 %v447, %v423
          %v452 = vmul.f32 %v448, %v424
          %v453 = vadd.f32 %v449, -30.664799
          %v454 = vadd.f32 %v450, -30.664799
          %v455 = vadd.f32 %v451, -30.664799
          %v456 = vadd.f32 %v452, -30.664799
          %v457 = vmul.f32 %v453, %v421
          %v458 = vmul.f32 %v454, %v422
          %v459 = vmul.f32 %v455, %v423
          %v460 = vmul.f32 %v456, %v424
          %v461 = vadd.f32 %v457, 2.5066283
          %v462 = vadd.f32 %v458, 2.5066283
          %v463 = vadd.f32 %v459, 2.5066283
          %v464 = vadd.f32 %v460, 2.5066283
          %v465 = vmul.f32 %v461, %v417
          %v466 = vmul.f32 %v462, %v418
          %v467 = vmul.f32 %v463, %v419
          %v468 = vmul.f32 %v464, %v420
          %v469 = vmul.f32 %v421, -54.476097
          %v470 = vmul.f32 %v422, -54.476097
          %v471 = vmul.f32 %v423, -54.476097
          %v472 = vmul.f32 %v424, -54.476097
          %v473 = vadd.f32 %v469, 161.58583
          %v474 = vadd.f32 %v470, 161.58583
          %v475 = vadd.f32 %v471, 161.58583
          %v476 = vadd.f32 %v472, 161.58583
          %v477 = vmul.f32 %v473, %v421
          %v478 = vmul.f32 %v474, %v422
          %v479 = vmul.f32 %v475, %v423
          %v480 = vmul.f32 %v476, %v424
          %v481 = vadd.f32 %v477, -155.69897
          %v482 = vadd.f32 %v478, -155.69897
          %v483 = vadd.f32 %v479, -155.69897
          %v484 = vadd.f32 %v480, -155.69897
          %v485 = vmul.f32 %v481, %v421
          %v486 = vmul.f32 %v482, %v422
          %v487 = vmul.f32 %v483, %v423
          %v488 = vmul.f32 %v484, %v424
          %v489 = vadd.f32 %v485, 66.801315
          %v490 = vadd.f32 %v486, 66.801315
          %v491 = vadd.f32 %v487, 66.801315
          %v492 = vadd.f32 %v488, 66.801315
          %v493 = vmul.f32 %v489, %v421
          %v494 = vmul.f32 %v490, %v422
          %v495 = vmul.f32 %v491, %v423
          %v496 = vmul.f32 %v492, %v424
          %v497 = vadd.f32 %v493, -13.280682
          %v498 = vadd.f32 %v494, -13.280682
          %v499 = vadd.f32 %v495, -13.280682
          %v500 = vadd.f32 %v496, -13.280682
          %v501 = vmul.f32 %v497, %v421
          %v502 = vmul.f32 %v498, %v422
          %v503 = vmul.f32 %v499, %v423
          %v504 = vmul.f32 %v500, %v424
          %v505 = vadd.f32 %v501, 1.0
          %v506 = vadd.f32 %v502, 1.0
          %v507 = vadd.f32 %v503, 1.0
          %v508 = vadd.f32 %v504, 1.0
          %v509 = vrcp.pop %v505
          %v510 = vmul.f32 %v465, %v509
          %v511 = vrcp.pop %v506
          %v512 = vmul.f32 %v466, %v511
          %v513 = vrcp.pop %v507
          %v514 = vmul.f32 %v467, %v513
          %v515 = vrcp.pop %v508
          %v516 = vmul.f32 %v468, %v515
          %vm517 = vcmp.lt.f32.partialorder %v293, 0.02425
          %vm518 = vcmp.lt.f32.partialorder %v294, 0.02425
          %vm519 = vcmp.lt.f32.partialorder %v295, 0.02425
          %vm520 = vcmp.lt.f32.partialorder %v296, 0.02425
          %v521 = vsel %vm517, %v410, %v510
          %v522 = vsel %vm518, %v412, %v512
          %v523 = vsel %vm519, %v414, %v514
          %v524 = vsel %vm520, %v416, %v516
          %vm525 = vcmp.gt.f32.partialorder %v281, 0.5
          %vm526 = vcmp.gt.f32.partialorder %v282, 0.5
          %vm527 = vcmp.gt.f32.partialorder %v283, 0.5
          %vm528 = vcmp.gt.f32.partialorder %v284, 0.5
          %v529 = vsub.f32 0.0, %v521
          %v530 = vsub.f32 0.0, %v522
          %v531 = vsub.f32 0.0, %v523
          %v532 = vsub.f32 0.0, %v524
          %v533 = vsel %vm525, %v529, %v521
          %v534 = vsel %vm526, %v530, %v522
          %v535 = vsel %vm527, %v531, %v523
          %v536 = vsel %vm528, %v532, %v524
          %v537 = vld [vmem:[%s201] sm:$0xff]
          %vm538 = vcmp.ne.s32.totalorder %v537, 0
          %v539 = vld [vmem:[%s171] sm:$0xff]
          %v544 = vcombine.low %v533, %v534
          %v545 = vcombine.low %v535, %v536
          %v547 = vunpack.c.l.s4 1983009808
          %v548 = vunpack.c.0.s8 %v547
          %v549 = vlaneseq
          %v550 = vshrl.u32 %v549, 7
          %v551 = vsub.s32 %v548, %v550
          %v552 = vrot.slane %v544, %v551
          %v554 = vunpack.c.l.s4 1983009808
          %v555 = vunpack.c.0.s8 %v554
          %v556 = vlaneseq
          %v557 = vshrl.u32 %v556, 7
          %v558 = vsub.s32 %v555, %v557
          %v559 = vrot.slane %v545, %v558
          %v560 = vcombine.low %v552, %v559
          %v562 = vsel %vm538, %v560, %v539
          %563 = vst [vmem:[%s196] sm:$0xff] %v562
        $region40: #{tpu_custom_call.1} parent=27 // pred_fallthru
          _
        %s564 = sand.u32 %s99, 1
        %s565 = scalar_lea.sflag [#allocation7], %s564
        %s566 = sand.u32 %s99, 1
        %s567 = smul.addr %s566, 8
        %s568 = scalar_lea.vmem [#allocation8], %s567
        // Predicated region
        $region41: #{tpu_custom_call.1} parent=27 // pred_check
          %p569 = pneg %p109
        $region42: #{tpu_custom_call.1} parent=27 // pred_check_branch
          %571 = sbr.rel (%p569) target = $region44
        $region43: #{tpu_custom_call.1} parent=27 // pred_region
          %s573 = ssub.s32 128, 128
          %574 = vsyncadd %s565, %s573
          %s575 = smul.addr %s27, 4
          %s576 = smul.addr %s28, 4
          %s577 = sadd.s32 %s575, %s576
          %s578 = smul.addr %s577, 32
          %s579 = scalar_lea.hbm %s4, %s578
          %s581 = sshll.u32 %s568, 4
          %s582 = int_to_ptr.vmem [resolvable:$true] %s581
          %584 = dma.vmem_to_hbm [thread:$0]  %s582, 128, %s579, %s565
        $region44: #{tpu_custom_call.1} parent=27 // pred_fallthru
          _
      $region28: #{tpu_custom_call.1} parent=5 // pred_fallthru
        _
      %p585 = scmp.le.s32.totalorder 2, %s18
      // Predicated region
      $region45: #{tpu_custom_call.1} parent=5 // pred_check
        %p586 = pneg %p585
      $region46: #{tpu_custom_call.1} parent=5 // pred_check_branch
        %588 = sbr.rel (%p586) target = $region48
      $region47: #{tpu_custom_call.1} parent=5 // pred_region
        %s589 = ssub.s32 %s18, 2
        // Predicated region
        $region49: #{tpu_custom_call.1} parent=47 // pred_check
          %p590 = pneg %p115
        $region50: #{tpu_custom_call.1} parent=47 // pred_check_branch
          %592 = sbr.rel (%p590) target = $region52
        $region51: #{tpu_custom_call.1} parent=47 // pred_region
          %s593 = sand.u32 %s100, 1
          %s594 = scalar_lea.sflag [#allocation7], %s593
          %s595 = sand.u32 %s100, 1
          %s596 = smul.addr %s595, 8
          %s597 = scalar_lea.vmem [#allocation8], %s596
          %598 = dma.done %s594, 128
        $region52: #{tpu_custom_call.1} parent=47 // pred_fallthru
          _
      $region48: #{tpu_custom_call.1} parent=5 // pred_fallthru
        _
    $region6: #{tpu_custom_call.1} parent=1 // loop_footer
      %s22 = sadd.s32 1, %s18
    $region7: #{tpu_custom_call.1} parent=1 // loop_footer_branch
      %17 = sbr.rel target = $region3
    $region8: #{tpu_custom_call.1} parent=1 // loop_exit
      _
    %599 = vsyncpa [#allocation6], 1
    %s600 = scalar_lea.sflag [#allocation6], 1
    %601 = vsyncpa %s600, 1
    %602 = vsyncpa [#allocation7], 1
    %s603 = scalar_lea.sflag [#allocation7], 1
    %604 = vsyncpa %s603, 1

</llo_original>
